<compile_context>
chip_gen: v7x
topology: tpu7x:2x2x1
jax: 0.10.0
libtpu: 0.0.40
codegen_flags: <defaults>
</compile_context>

<pallas_src>
import math
from datetime import datetime

import numpy as np
import jax
import jax.numpy as jnp
from jax.experimental import pallas as pl
from jax.experimental.pallas import tpu as pltpu


def _obs_embed_kernel(x_ref, w_ref, add_ref, o_ref):
    """out = x_packed @ W_packed + add  (one MXU matmul, one VPU add, one full-block store)."""
    h = jnp.dot(x_ref[...], w_ref[...], preferred_element_type=jnp.float32)
    o_ref[...] = (h + add_ref[...]).astype(o_ref.dtype)


def _round_up(x, m):
    return ((x + m - 1) // m) * m


def _choose_tile(rows_p, rpb, in_lanes, out_lanes, *, target_rows=512, min_steps=4,
                 vmem_budget_bytes=8 << 20):
    """Pick the packed-row tile size.

    Constraints: multiple of rpb (period of the additive pos table) and of 8 (sublane
    alignment) whenever the grid has more than one step; small enough that the grid has
    several steps (DMA/compute overlap + v7x megacore sharding) and that the lane-padded,
    double-buffered VMEM footprint stays under the budget (matters on v5e 16 MiB scoped
    default and v7x 64 MiB physical).
    """
    unit = (rpb * 8) // math.gcd(rpb, 8)          # lcm(rpb, 8)

    def footprint(tm):
        lp_in = _round_up(in_lanes, 128)          # VMEM pads lanes to 128
        lp_out = _round_up(out_lanes, 128)
        # 2x-buffered x tile + 2x-buffered out tile + resident add table + resident weight
        return 4 * (2 * tm * lp_in + 2 * tm * lp_out + tm * lp_out + in_lanes * lp_out)

    if rows_p <= unit:
        return rows_p                              # tiny problem: one full (unconstrained) tile
    tm = min((target_rows // unit) * unit or unit,
             (rows_p // (min_steps * unit)) * unit or unit)
    tm = max(tm, unit)
    while tm > unit and footprint(tm) > vmem_budget_bytes:
        tm -= unit
    return tm


def observation_embedding(features, pos_encoding, w, b):
    """features: (B,T,F) f32; pos_encoding: (T, E/2) f32; w: (F, E/2); b: (E/2,) -> (B,T,E)."""
    B, T, F = features.shape
    Tp, half = pos_encoding.shape
    assert Tp == T, "positional encoding table must have one row per time step"
    E = 2 * half
    rows = B * T

    # Lane-dense packing factor: p consecutive time rows share one 128-lane output row.
    p = 128 // E if (E <= 128 and 128 % E == 0 and T % max(1, 128 // E) == 0) else 1
    lanes = p * E                 # output lane width (=128 on the packed path)
    kdim = p * F                  # packed contraction dim
    rows_p = rows // p            # packed rows
    rpb = T // p                  # packed rows per batch element = period of the pos table

    # Block-diagonal packed weight: output lanes [j*E, j*E+half) are produced from input
    # lanes [j*F, (j+1)*F); the date half of every sub-slot gets zero weight.
    w32 = w.astype(jnp.float32)
    w_packed = jnp.zeros((kdim, lanes), dtype=jnp.float32)
    for j in range(p):
        w_packed = w_packed.at[j * F:(j + 1) * F, j * E:j * E + half].set(w32)

    # Packed additive table: bias in the feature-embedding lanes, positional encoding in
    # the date lanes.  Period over packed rows is rpb; it is pre-broadcast to exactly one
    # tile here (built once, outside the kernel) and stays VMEM-resident across all steps.
    pos_r = pos_encoding.astype(jnp.float32).reshape(rpb, p, half)
    b32 = b.astype(jnp.float32)
    add_period = jnp.zeros((rpb, lanes), dtype=jnp.float32)
    for j in range(p):
        add_period = add_period.at[:, j * E:j * E + half].set(
            jnp.broadcast_to(b32[None, :], (rpb, half)))
        add_period = add_period.at[:, j * E + half:(j + 1) * E].set(pos_r[:, j, :])

    tm = _choose_tile(rows_p, rpb, kdim, lanes)
    rows_pad = _round_up(rows_p, tm)
    grid = (rows_pad // tm,)

    x = features.astype(jnp.float32).reshape(rows_p, kdim)    # free row-major reshape
    if rows_pad != rows_p:
        x = jnp.concatenate(
            [x, jnp.zeros((rows_pad - rows_p, kdim), dtype=x.dtype)], axis=0)

    add_tile = jnp.tile(add_period, (tm // rpb, 1))            # (tm, lanes), built once

    out = pl.pallas_call(
        _obs_embed_kernel,
        out_shape=jax.ShapeDtypeStruct((rows_pad, lanes), jnp.float32),
        grid_spec=pltpu.PrefetchScalarGridSpec(
            num_scalar_prefetch=0,
            grid=grid,
            in_specs=[
                pl.BlockSpec((tm, kdim), lambda i: (i, 0)),      # packed feature rows
                pl.BlockSpec((kdim, lanes), lambda i: (0, 0)),   # packed weight (resident)
                pl.BlockSpec((tm, lanes), lambda i: (0, 0)),     # bias+pos table (resident)
            ],
            out_specs=pl.BlockSpec((tm, lanes), lambda i: (i, 0)),
        ),
        compiler_params=pltpu.CompilerParams(
            dimension_semantics=("parallel",),                   # megacore-shardable rows
            vmem_limit_bytes=32 << 20,
        ),
    )(x, w_packed, add_tile)

    out = out.reshape(rows_pad * p, E)[:rows]                    # free reshape + slice
    return out.reshape(B, T, E)


def positional_encoding_table(dates, date_embed_dim):
    """Faithful numpy port of ObservationEmbedding.positional_encoding (per-timestep table)."""
    # TODO(synk): host-side datetime parsing (year-1900 '%m%d' strings) has no in-kernel
    # equivalent; it is computed here exactly as in the PyTorch module.
    start_date = datetime.strptime(min(dates), "%m%d")
    positions = [(datetime.strptime(d, "%m%d") - start_date).days for d in dates]
    pos_encoding = np.zeros((len(positions), date_embed_dim), dtype=np.float64)
    for pos, day in enumerate(positions):
        for i in range(0, date_embed_dim, 2):
            pos_encoding[pos, i] = np.sin(day / 10000 ** (2 * i / date_embed_dim))
            pos_encoding[pos, i + 1] = np.cos(day / 10000 ** (2 * i / date_embed_dim))
    return jnp.asarray(pos_encoding, dtype=jnp.float32)


if __name__ == "__main__":
    # Small shapes consistent with the forward pass.
    batch_size = 2
    time_steps = 8
    feature_dim = 16
    embedding_dim = 32
    half = embedding_dim // 2

    key = jax.random.PRNGKey(0)
    k_x, k_w, k_b = jax.random.split(key, 3)

    # Deterministic synthetic parameters (nn.Linear(feature_dim, embedding_dim // 2)).
    w = jax.random.normal(k_w, (feature_dim, half), dtype=jnp.float32) * 0.1
    b = jax.random.normal(k_b, (half,), dtype=jnp.float32) * 0.1

    features = jax.random.normal(
        k_x, (batch_size, time_steps, feature_dim), dtype=jnp.float32
    )
    dates = ["0101", "0103", "0106", "0110", "0115", "0121", "0128", "0205"]
    assert len(dates) == time_steps

    pos_enc = positional_encoding_table(dates, half)

    out = jax.block_until_ready(observation_embedding(features, pos_enc, w, b))

    # Pure-JAX reference check.
    ref_feat = features @ w + b
    ref_pos = jnp.broadcast_to(pos_enc[None], (batch_size, time_steps, half))
    ref = jnp.concatenate([ref_feat, ref_pos], axis=-1)
    np.testing.assert_allclose(np.asarray(out), np.asarray(ref), rtol=1e-4, atol=1e-4)
    assert out.shape == (batch_size, time_steps, embedding_dim)

    # Slightly larger batch to exercise the multi-step (pipelined / megacore-shardable) grid.
    B2 = 64
    feats2 = jax.random.normal(
        jax.random.PRNGKey(1), (B2, time_steps, feature_dim), dtype=jnp.float32
    )
    out2 = jax.block_until_ready(observation_embedding(feats2, pos_enc, w, b))
    ref2 = jnp.concatenate(
        [feats2 @ w + b, jnp.broadcast_to(pos_enc[None], (B2, time_steps, half))], axis=-1
    )
    np.testing.assert_allclose(np.asarray(out2), np.asarray(ref2), rtol=1e-4, atol=1e-4)

    print("KERNEL_OK")
</pallas_src>

<mosaic_0001>
module attributes {stable_mosaic.version = 11 : i64} {
  func.func @_obs_embed_kernel(%arg0: i32, %arg1: memref<4x64xf32, #tpu.memory_space<vmem>>, %arg2: memref<64x128xf32, #tpu.memory_space<vmem>>, %arg3: memref<4x128xf32, #tpu.memory_space<vmem>>, %arg4: memref<4x128xf32, #tpu.memory_space<vmem>>) attributes {dimension_semantics = [#tpu.dimension_semantics<parallel>], iteration_bounds = array<i64: 1>, scalar_prefetch = 0 : i64, scratch_operands = 0 : i64, tpu.core_type = #tpu.core_type<tc>, window_params = [{transform_indices = @transform_0, window_bounds = array<i64: 4, 64>}, {pipeline_mode = #tpu.pipeline_mode<synchronous>, transform_indices = @transform_1, window_bounds = array<i64: 64, 128>}, {pipeline_mode = #tpu.pipeline_mode<synchronous>, transform_indices = @transform_2, window_bounds = array<i64: 4, 128>}, {transform_indices = @transform_3, window_bounds = array<i64: 4, 128>}]} {
    %c0 = arith.constant 0 : index
    %c0_0 = arith.constant 0 : index
    %0 = vector.load %arg1[%c0, %c0_0] : memref<4x64xf32, #tpu.memory_space<vmem>>, vector<4x64xf32>
    %c0_1 = arith.constant 0 : index
    %c0_2 = arith.constant 0 : index
    %1 = vector.load %arg2[%c0_1, %c0_2] : memref<64x128xf32, #tpu.memory_space<vmem>>, vector<64x128xf32>
    %cst = arith.constant dense<0.000000e+00> : vector<4x128xf32>
    %2 = tpu.matmul %0, %1, %cst {dimension_numbers = #tpu.dot_dimension_numbers<[1], [0], [0], [1], [0, 0, 1, 1], [], []>} : vector<4x64xf32>, vector<64x128xf32>, vector<4x128xf32> -> vector<4x128xf32>
    %c0_3 = arith.constant 0 : index
    %c0_4 = arith.constant 0 : index
    %3 = vector.load %arg3[%c0_3, %c0_4] : memref<4x128xf32, #tpu.memory_space<vmem>>, vector<4x128xf32>
    %4 = arith.addf %2, %3 : vector<4x128xf32>
    %c0_5 = arith.constant 0 : index
    %c0_6 = arith.constant 0 : index
    %5 = vector.load %arg4[%c0_5, %c0_6] : memref<4x128xf32, #tpu.memory_space<vmem>>, vector<4x128xf32>
    tpu.vector_store %arg4[%c0_5, %c0_6], %4 {strides = array<i32>} : memref<4x128xf32, #tpu.memory_space<vmem>>, vector<4x128xf32>,
    return
  }
  func.func @transform_0(%arg0: i32) -> (i32, i32) {
    %c0_i32 = arith.constant 0 : i32
    %c0_i32_0 = arith.constant 0 : i32
    return %arg0, %c0_i32 : i32, i32
  }
  func.func @transform_1(%arg0: i32) -> (i32, i32) {
    %c0_i32 = arith.constant 0 : i32
    %c0_i32_0 = arith.constant 0 : i32
    %c0_i32_1 = arith.constant 0 : i32
    return %c0_i32, %c0_i32_0 : i32, i32
  }
  func.func @transform_2(%arg0: i32) -> (i32, i32) {
    %c0_i32 = arith.constant 0 : i32
    %c0_i32_0 = arith.constant 0 : i32
    %c0_i32_1 = arith.constant 0 : i32
    return %c0_i32, %c0_i32_0 : i32, i32
  }
  func.func @transform_3(%arg0: i32) -> (i32, i32) {
    %c0_i32 = arith.constant 0 : i32
    %c0_i32_0 = arith.constant 0 : i32
    return %arg0, %c0_i32 : i32, i32
  }
}

</mosaic_0001>

<llo_original>
// kernel: tpu_custom_call.1
$region0: #{tpu_custom_call.1}
  #allocation0 [shape = 'u32[]', space=smem, size = 0x4, offset = 0x4, fixed_abs, tag = 'smem constant byte address 0x4 - core index']
  #allocation1 [shape = 'u32[144,128]{1,0:T(1,128)}', space=vmem, size = 0x12000, scoped, tag = 'internal scratch']
  %s0 = inlined_call_operand.hbm [shape: f32[4,64], index: 0, kind: input, shape index: {}]
  %s1 = inlined_call_operand.hbm [shape: f32[64,128], index: 1, kind: input, shape index: {}]
  %s2 = inlined_call_operand.vmem [shape: f32[4,128], index: 2, kind: input, shape index: {}]
  %s3 = inlined_call_operand.hbm [shape: f32[4,128], index: 3, kind: output, shape index: {}]
  %s4 = sld [smem:[#allocation0]]
  $region30: #{tpu_custom_call.1} parent=0
    _
  %s6 = ssub.s32 1, %s4
  %s7 = scalar_select 0, %s6, %s4
  $region1: #{tpu_custom_call.1} parent=0
    #allocation2 [shape = 'u8[2048]{0}', space=vmem, size = 0x800, scoped, tag = 'input window, operand 0, single buffered']
    #allocation3 [shape = 's32[1]{0}', space=sflag, size = 0x4, scoped, tag = 'scoped memory for tpu_custom_call.1']
    #allocation4 [shape = 's32[1]{0}', space=sflag, size = 0x4, scoped, tag = 'scoped memory for tpu_custom_call.1']
    #allocation5 [shape = 'u8[32768]{0}', space=vmem, size = 0x8000, scoped, tag = 'input window, operand 1, single buffered']
    #allocation6 [shape = 's32[1]{0}', space=sflag, size = 0x4, scoped, tag = 'scoped memory for tpu_custom_call.1']
    #allocation7 [shape = 'u8[2048]{0}', space=vmem, size = 0x800, scoped, tag = 'output window, operand 0, single buffered']
    %8 = vsyncpa [#allocation3], 0
    %9 = vsyncpa [#allocation6], 0
    %10 = vsyncpa [#allocation4], 0
    // Predicated region
    $region2: #{tpu_custom_call.1} parent=1 // pred_check
      _
    $region3: #{tpu_custom_call.1} parent=1 // pred_check_branch
      %12 = sbr.rel (0) target = $region5
    $region4: #{tpu_custom_call.1} parent=1 // pred_region
      %s14 = ssub.s32 64, 64
      %15 = vsyncadd [#allocation3], %s14
      %s17 = sshll.u32 [#allocation2], 4
      %s18 = int_to_ptr.vmem [resolvable:$true] %s17
      %20 = dma.hbm_to_vmem [thread:$0]  %s0, 64, %s18, [#allocation3]
    $region5: #{tpu_custom_call.1} parent=1 // pred_fallthru
      _
    // Predicated region
    $region6: #{tpu_custom_call.1} parent=1 // pred_check
      _
    $region7: #{tpu_custom_call.1} parent=1 // pred_check_branch
      %22 = sbr.rel (0) target = $region9
    $region8: #{tpu_custom_call.1} parent=1 // pred_region
      %s24 = ssub.s32 1024, 1024
      %25 = vsyncadd [#allocation6], %s24
      %s26 = sshll.u32 [#allocation5], 4
      %s27 = int_to_ptr.vmem [resolvable:$true] %s26
      %32 = dma.hbm_to_vmem [thread:$0]  %s1, 1024, %s27, [#allocation6], 128, 128, 8
    $region9: #{tpu_custom_call.1} parent=1 // pred_fallthru
      _
    // Predicated region
    $region10: #{tpu_custom_call.1} parent=1 // pred_check
      _
    $region11: #{tpu_custom_call.1} parent=1 // pred_check_branch
      %34 = sbr.rel (0) target = $region13
    $region12: #{tpu_custom_call.1} parent=1 // pred_region
      _
    $region13: #{tpu_custom_call.1} parent=1 // pred_fallthru
      _
    // Predicated region
    $region14: #{tpu_custom_call.1} parent=1 // pred_check
      _
    $region15: #{tpu_custom_call.1} parent=1 // pred_check_branch
      %36 = sbr.rel (0) target = $region17
    $region16: #{tpu_custom_call.1} parent=1 // pred_region
      %37 = dma.done [#allocation3], 64
    $region17: #{tpu_custom_call.1} parent=1 // pred_fallthru
      _
    // Predicated region
    $region18: #{tpu_custom_call.1} parent=1 // pred_check
      _
    $region19: #{tpu_custom_call.1} parent=1 // pred_check_branch
      %39 = sbr.rel (0) target = $region21
    $region20: #{tpu_custom_call.1} parent=1 // pred_region
      %40 = dma.done [#allocation6], 1024
    $region21: #{tpu_custom_call.1} parent=1 // pred_fallthru
      _
    %v41 = vld [vmem:[#allocation2] sm:$0xf]
    %v42 = vld [vmem:[#allocation5] sm:$0xff]
    %v43 = vld [vmem:[#allocation5 + $0x8] sm:$0xff]
    %v44 = vld [vmem:[#allocation5 + $0x10] sm:$0xff]
    %v45 = vld [vmem:[#allocation5 + $0x18] sm:$0xff]
    %v46 = vld [vmem:[#allocation5 + $0x20] sm:$0xff]
    %v47 = vld [vmem:[#allocation5 + $0x28] sm:$0xff]
    %v48 = vld [vmem:[#allocation5 + $0x30] sm:$0xff]
    %v49 = vld [vmem:[#allocation5 + $0x38] sm:$0xff]
    %v50 = vld [vmem:[%s2] sm:$0xf]
    %vm51 = vcmask 523264
    %v53 = vsel %vm51, %v41, 0
    %55 = vmatprep.subr.mxu0 0.0
    %56 = vmatpush1.msra.mxu0 %v42
    %57 = vmatprep.subr.mxu0 0.0
    %58 = vmatpush1.msra.mxu0 %v43
    %59 = vmatprep.subr.mxu0 0.0
    %60 = vmatpush1.msra.mxu0 %v44
    %61 = vmatprep.subr.mxu0 0.0
    %62 = vmatpush1.msra.mxu0 %v45
    %63 = vmatprep.subr.mxu0 0.0
    %64 = vmatpush1.msra.mxu0 %v46
    %65 = vmatprep.subr.mxu0 0.0
    %66 = vmatpush1.msra.mxu0 %v47
    %67 = vmatprep.subr.mxu0 0.0
    %68 = vmatpush1.msra.mxu0 %v48
    %69 = vmatprep.subr.mxu0 0.0
    %70 = vmatpush1.msra.mxu0 %v49
    %71 = vmatprep.subr.mxu0 0.0
    %72 = vmatpush1.msra.mxu0 0.0
    %73 = vmatprep.subr.mxu0 0.0
    %74 = vmatpush1.msra.mxu0 0.0
    %75 = vmatprep.subr.mxu0 0.0
    %76 = vmatpush1.msra.mxu0 0.0
    %77 = vmatprep.subr.mxu0 0.0
    %78 = vmatpush1.msra.mxu0 0.0
    %79 = vmatprep.subr.mxu0 0.0
    %80 = vmatpush1.msra.mxu0 0.0
    %81 = vmatprep.subr.mxu0 0.0
    %82 = vmatpush1.msra.mxu0 0.0
    %83 = vmatprep.subr.mxu0 0.0
    %84 = vmatpush1.msra.mxu0 0.0
    %85 = vmatprep.subr.mxu0 0.0
    %86 = vmatpush1.msra.mxu0 0.0
    %87 = vmatprep.subr.mxu0 0.0
    %88 = vmatpush1.msra.mxu0 0.0
    %89 = vmatprep.subr.mxu0 0.0
    %90 = vmatpush1.msra.mxu0 0.0
    %91 = vmatprep.subr.mxu0 0.0
    %92 = vmatpush1.msra.mxu0 0.0
    %93 = vmatprep.subr.mxu0 0.0
    %94 = vmatpush1.msra.mxu0 0.0
    %95 = vmatprep.subr.mxu0 0.0
    %96 = vmatpush1.msra.mxu0 0.0
    %97 = vmatprep.subr.mxu0 0.0
    %98 = vmatpush1.msra.mxu0 0.0
    %99 = vmatprep.subr.mxu0 0.0
    %100 = vmatpush1.msra.mxu0 0.0
    %101 = vmatprep.subr.mxu0 0.0
    %102 = vmatpush1.msra.mxu0 0.0
    %103 = vmatprep.subr.mxu0 0.0
    %104 = vmatpush1.msra.mxu0 0.0
    %105 = vmatprep.subr.mxu0 0.0
    %106 = vmatpush1.msra.mxu0 0.0
    %107 = vmatprep.subr.mxu0 0.0
    %108 = vmatpush1.msra.mxu0 0.0
    %109 = vmatprep.subr.mxu0 0.0
    %110 = vmatpush1.msra.mxu0 0.0
    %111 = vmatprep.subr.mxu0 0.0
    %112 = vmatpush1.msra.mxu0 0.0
    %113 = vmatprep.subr.mxu0 0.0
    %114 = vmatpush1.msra.mxu0 0.0
    %115 = vmatprep.subr.mxu0 0.0
    %116 = vmatpush1.msra.mxu0 0.0
    %117 = vmatprep.subr.mxu0 0.0
    %118 = vmatpush1.msra.mxu0 0.0
    %119 = vmatprep.mubr.f32.mxu0 0.0
    %120 = vmatmul.mubr.f32.gmra.mrb[0].mxu0 %v53
    %v121 = vpop.f32.mrb[0].mxu0
    %v122 = vadd.f32 %v50, %v121
    %v123 = vpop.f32.mrb[0].mxu0
    %124 = vdwg.mxu0
    %125 = vst [vmem:[#allocation7] sm:$0xf] %v122
    // Predicated region
    $region22: #{tpu_custom_call.1} parent=1 // pred_check
      _
    $region23: #{tpu_custom_call.1} parent=1 // pred_check_branch
      %127 = sbr.rel (0) target = $region25
    $region24: #{tpu_custom_call.1} parent=1 // pred_region
      %s129 = ssub.s32 64, 64
      %130 = vsyncadd [#allocation4], %s129
      %s132 = sshll.u32 [#allocation7], 4
      %s133 = int_to_ptr.vmem [resolvable:$true] %s132
      %135 = dma.vmem_to_hbm [thread:$0]  %s133, 64, %s3, [#allocation4]
    $region25: #{tpu_custom_call.1} parent=1 // pred_fallthru
      _
    // Predicated region
    $region26: #{tpu_custom_call.1} parent=1 // pred_check
      _
    $region27: #{tpu_custom_call.1} parent=1 // pred_check_branch
      %137 = sbr.rel (0) target = $region29
    $region28: #{tpu_custom_call.1} parent=1 // pred_region
      %138 = dma.done [#allocation4], 64
    $region29: #{tpu_custom_call.1} parent=1 // pred_fallthru
      _
    %139 = vsyncpa [#allocation3], 1
    %140 = vsyncpa [#allocation6], 1
    %141 = vsyncpa [#allocation4], 1

</llo_original>
